<compile_context>
chip_gen: v6e
topology: v6e:2x2x1
jax: 0.10.0
libtpu: 0.0.40
codegen_flags: <defaults>
</compile_context>

<pallas_src>
import numpy as np
import jax
import jax.numpy as jnp
from jax.experimental import pallas as pl
from jax.experimental.pallas import tpu as pltpu


# --------------------------------------------------------------------------
# Fused Pallas kernel (static config closed over at trace time)
# --------------------------------------------------------------------------
def make_drnn_kernel(dilations, hidden_structure, num_steps, batch_size,
                     n_classes):
    n_layers = len(dilations)
    T, B = num_steps, batch_size

    def kernel(*refs):
        # refs: x_flat, hx, (w_ih, w_hh, bias) per layer, W, b, out
        x_ref, hx_ref = refs[0], refs[1]
        cell_refs = refs[2:2 + 3 * n_layers]
        w_ref = refs[2 + 3 * n_layers]        # readout weight [H_last*d0, C]
        bout_ref = refs[3 + 3 * n_layers]     # readout bias   [1, C]
        out_ref = refs[4 + 3 * n_layers]      # logits         [B, C]

        # Time-major flattened sequence: row t*B + b  <->  (time t, sample b).
        seq_all = x_ref[...]                  # [T*B, D_in]  (D_in = 1)

        for li in range(n_layers):
            rate = dilations[li]
            H = hidden_structure[li]
            w_ih = cell_refs[3 * li][...]      # [D_in, H]
            w_hh = cell_refs[3 * li + 1][...]  # [H, H]
            bias = cell_refs[3 * li + 2][...]  # [1, H]  (= b_ih + b_hh)

            # ---- hoisted input projection: ONE op over all T*B rows --------
            if w_ih.shape[0] == 1:
                # D_in == 1: skip the MXU (K=1 contraction is ~1/128 of the
                # systolic depth); pure VPU lane/sublane broadcast-multiply.
                pre_all = seq_all * w_ih + bias                     # [T*B, H]
            else:
                pre_all = jnp.dot(seq_all, w_ih,
                                  preferred_element_type=jnp.float32) + bias

            Td = T // rate + (1 if T % rate else 0)
            pad = Td * rate - T               # number of padded tail phases

            # ---- fused dilated recurrence on the [rate*B, H] dilated batch -
            # Phase r lives in rows r*B:(r+1)*B; all `rate` independent phase
            # chains advance with ONE matmul + tanh per dilated step.
            if li == 0:
                h = (jnp.concatenate([hx_ref[...]] * rate, axis=0)
                     if rate > 1 else hx_ref[...])
            else:
                h = jnp.zeros((rate * B, H), jnp.float32)

            out_blocks = []
            for i in range(Td):
                lo = i * rate * B
                if i < Td - 1 or pad == 0:
                    h = jnp.tanh(
                        pre_all[lo:lo + rate * B]
                        + jnp.dot(h, w_hh,
                                  preferred_element_type=jnp.float32))
                    out_blocks.append(h)
                else:
                    # Partial last dilated step: padded phases are discarded
                    # and never feed a later step -> don't compute them.
                    valid = (rate - pad) * B
                    out_blocks.append(jnp.tanh(
                        pre_all[lo:lo + valid]
                        + jnp.dot(h[:valid], w_hh,
                                  preferred_element_type=jnp.float32)))
            seq_all = (out_blocks[0] if len(out_blocks) == 1
                       else jnp.concatenate(out_blocks, axis=0))    # [T*B, H]

        # ---- readout: concat of the last d0 hidden outputs folded into -----
        # ---- row-sliced matmuls (no in-kernel lane concat) ------------------
        d0 = dilations[0]
        H_last = hidden_structure[-1]
        w_out = w_ref[...]
        if d0 == 1:
            logits = jnp.dot(seq_all[(T - 1) * B:T * B], w_out,
                             preferred_element_type=jnp.float32)
        else:
            logits = jnp.zeros((B, n_classes), jnp.float32)
            for k in range(d0):
                t = T - d0 + k
                logits = logits + jnp.dot(
                    seq_all[t * B:(t + 1) * B],
                    w_out[k * H_last:(k + 1) * H_last, :],
                    preferred_element_type=jnp.float32)
        out_ref[...] = logits + bout_ref[...]

    return kernel


# --------------------------------------------------------------------------
# Wrapper
# --------------------------------------------------------------------------
def drnn_forward(x_seq, hx, W, b, cell_params, dilations, hidden_structure,
                 num_steps, batch_size, n_classes):
    """x_seq: [T, B, D] float32 -> logits [B, n_classes]."""
    T, B, D = x_seq.shape
    # Lane/DMA-friendly layout: one time-major flattened [T*B, D] array
    # (single contiguous DMA) instead of T separate [B, 1] padded tiles.
    x_flat = x_seq.reshape(T * B, D)

    inputs = [x_flat, hx]
    for (w_ih, w_hh, b_ih, b_hh) in cell_params:
        inputs += [w_ih, w_hh, b_ih + b_hh]   # pre-sum the two cell biases
    inputs += [W, b]

    kernel = make_drnn_kernel(dilations, hidden_structure, num_steps,
                              batch_size, n_classes)
    return pl.pallas_call(
        kernel,
        out_shape=jax.ShapeDtypeStruct((batch_size, n_classes), jnp.float32),
        in_specs=[pl.BlockSpec(memory_space=pltpu.MemorySpace.VMEM)
                  for _ in inputs],
        out_specs=pl.BlockSpec(memory_space=pltpu.MemorySpace.VMEM),
        compiler_params=pltpu.CompilerParams(
            vmem_limit_bytes=64 * 1024 * 1024),
    )(*inputs)


# --------------------------------------------------------------------------
# Pure-JAX reference (silent correctness check)
# --------------------------------------------------------------------------
def drnn_forward_ref(x_seq, hx, W, b, cell_params, dilations, num_steps,
                     batch_size):
    seq = [x_seq[t] for t in range(num_steps)]
    for li, (rate, (w_ih, w_hh, b_ih, b_hh)) in enumerate(
            zip(dilations, cell_params)):
        n = len(seq)
        if n % rate != 0:
            seq = seq + [jnp.zeros_like(seq[0])] * (rate - n % rate)
        Td = len(seq) // rate
        H = w_ih.shape[1]
        h = (jnp.tile(hx, (rate, 1)) if li == 0
             else jnp.zeros((rate * batch_size, H), jnp.float32))
        outs = []
        for i in range(Td):
            x_dil = jnp.concatenate(seq[i * rate:(i + 1) * rate], axis=0)
            h = jnp.tanh(x_dil @ w_ih + b_ih + h @ w_hh + b_hh)
            outs.append(h)
        new_seq = []
        for o in outs:
            for r in range(rate):
                new_seq.append(o[r * batch_size:(r + 1) * batch_size])
        seq = new_seq[:n]
    d0 = dilations[0]
    feat = (seq[-1] if d0 == 1
            else jnp.concatenate([seq[i] for i in range(-d0, 0)], axis=1))
    return feat @ W + b


# --------------------------------------------------------------------------
# Main
# --------------------------------------------------------------------------
if __name__ == "__main__":
    # Small config consistent with the module (cell_type='RNN',
    # embedding_dim=1). One dilation layer keeps the reference forward
    # well-defined (all cells in the module have input size 1).
    hidden_structure = [32]
    dilations = [2]
    num_steps = 8
    n_classes = 10
    batch_size = 4
    embedding_dim = 1

    key = jax.random.PRNGKey(0)
    keys = jax.random.split(key, 8)

    # Input sequence: num_steps tensors of [batch, embedding_dim]
    x_seq = jax.random.normal(keys[0], (num_steps, batch_size, embedding_dim),
                              dtype=jnp.float32)
    # initHidden(): hx, W, b
    hx = jax.random.normal(keys[1], (batch_size, hidden_structure[0]),
                           dtype=jnp.float32)
    W = jax.random.normal(
        keys[2], (hidden_structure[-1] * dilations[0], n_classes),
        dtype=jnp.float32)
    b = jax.random.normal(keys[3], (1, n_classes), dtype=jnp.float32)

    # RNNCell parameters (PyTorch: weight_ih [H,in], weight_hh [H,H]; kept
    # pre-transposed to [in,H] / [H,H] for x @ W layouts).
    cell_params = []
    kidx = 4
    in_dim = embedding_dim
    for H in hidden_structure:
        kk = jax.random.split(keys[kidx], 4)
        kidx += 1
        bound = 1.0 / np.sqrt(H)
        w_ih = jax.random.uniform(kk[0], (in_dim, H), jnp.float32, -bound, bound)
        w_hh = jax.random.uniform(kk[1], (H, H), jnp.float32, -bound, bound)
        b_ih = jax.random.uniform(kk[2], (1, H), jnp.float32, -bound, bound)
        b_hh = jax.random.uniform(kk[3], (1, H), jnp.float32, -bound, bound)
        cell_params.append((w_ih, w_hh, b_ih, b_hh))
        in_dim = H

    out = drnn_forward(x_seq, hx, W, b, cell_params, dilations,
                       hidden_structure, num_steps, batch_size, n_classes)
    out = jax.block_until_ready(out)

    ref = drnn_forward_ref(x_seq, hx, W, b, cell_params, dilations, num_steps,
                           batch_size)
    np.testing.assert_allclose(np.asarray(out), np.asarray(ref),
                               rtol=1e-5, atol=1e-5)

    print("KERNEL_OK")
</pallas_src>

<mosaic_0001>
module attributes {stable_mosaic.version = 11 : i64} {
  func.func @kernel(%arg0: memref<32x1xf32, #tpu.memory_space<vmem>>, %arg1: memref<4x32xf32, #tpu.memory_space<vmem>>, %arg2: memref<1x32xf32, #tpu.memory_space<vmem>>, %arg3: memref<32x32xf32, #tpu.memory_space<vmem>>, %arg4: memref<1x32xf32, #tpu.memory_space<vmem>>, %arg5: memref<64x10xf32, #tpu.memory_space<vmem>>, %arg6: memref<1x10xf32, #tpu.memory_space<vmem>>, %arg7: memref<4x10xf32, #tpu.memory_space<vmem>>) attributes {dimension_semantics = [], scalar_prefetch = 0 : i64, scratch_operands = 0 : i64, tpu.core_type = #tpu.core_type<tc>} {
    %c0 = arith.constant 0 : index
    %c0_0 = arith.constant 0 : index
    %0 = vector.load %arg0[%c0, %c0_0] : memref<32x1xf32, #tpu.memory_space<vmem>>, vector<32x1xf32>
    %c0_1 = arith.constant 0 : index
    %c0_2 = arith.constant 0 : index
    %1 = vector.load %arg2[%c0_1, %c0_2] : memref<1x32xf32, #tpu.memory_space<vmem>>, vector<1x32xf32>
    %c0_3 = arith.constant 0 : index
    %c0_4 = arith.constant 0 : index
    %2 = vector.load %arg3[%c0_3, %c0_4] : memref<32x32xf32, #tpu.memory_space<vmem>>, vector<32x32xf32>
    %c0_5 = arith.constant 0 : index
    %c0_6 = arith.constant 0 : index
    %3 = vector.load %arg4[%c0_5, %c0_6] : memref<1x32xf32, #tpu.memory_space<vmem>>, vector<1x32xf32>
    %4 = vector.broadcast %0 : vector<32x1xf32> to vector<32x32xf32>
    %5 = vector.broadcast %1 : vector<1x32xf32> to vector<32x32xf32>
    %6 = arith.mulf %4, %5 : vector<32x32xf32>
    %7 = vector.broadcast %3 : vector<1x32xf32> to vector<32x32xf32>
    %8 = arith.addf %6, %7 : vector<32x32xf32>
    %c0_7 = arith.constant 0 : index
    %c0_8 = arith.constant 0 : index
    %9 = vector.load %arg1[%c0_7, %c0_8] : memref<4x32xf32, #tpu.memory_space<vmem>>, vector<4x32xf32>
    %10 = tpu.concatenate %9, %9 in 0 : vector<4x32xf32>, vector<4x32xf32> -> vector<8x32xf32>
    %11 = vector.extract_strided_slice %8 {offsets = [0, 0], sizes = [8, 32], strides = [1, 1]} : vector<32x32xf32> to vector<8x32xf32>
    %cst = arith.constant dense<0.000000e+00> : vector<8x32xf32>
    %12 = tpu.matmul %10, %2, %cst {dimension_numbers = #tpu.dot_dimension_numbers<[1], [0], [0], [1], [0, 0, 1, 1], [], []>} : vector<8x32xf32>, vector<32x32xf32>, vector<8x32xf32> -> vector<8x32xf32>
    %13 = arith.addf %11, %12 : vector<8x32xf32>
    %14 = math.tanh %13 : vector<8x32xf32>
    %15 = vector.extract_strided_slice %8 {offsets = [8, 0], sizes = [8, 32], strides = [1, 1]} : vector<32x32xf32> to vector<8x32xf32>
    %cst_9 = arith.constant dense<0.000000e+00> : vector<8x32xf32>
    %16 = tpu.matmul %14, %2, %cst_9 {dimension_numbers = #tpu.dot_dimension_numbers<[1], [0], [0], [1], [0, 0, 1, 1], [], []>} : vector<8x32xf32>, vector<32x32xf32>, vector<8x32xf32> -> vector<8x32xf32>
    %17 = arith.addf %15, %16 : vector<8x32xf32>
    %18 = math.tanh %17 : vector<8x32xf32>
    %19 = vector.extract_strided_slice %8 {offsets = [16, 0], sizes = [8, 32], strides = [1, 1]} : vector<32x32xf32> to vector<8x32xf32>
    %cst_10 = arith.constant dense<0.000000e+00> : vector<8x32xf32>
    %20 = tpu.matmul %18, %2, %cst_10 {dimension_numbers = #tpu.dot_dimension_numbers<[1], [0], [0], [1], [0, 0, 1, 1], [], []>} : vector<8x32xf32>, vector<32x32xf32>, vector<8x32xf32> -> vector<8x32xf32>
    %21 = arith.addf %19, %20 : vector<8x32xf32>
    %22 = math.tanh %21 : vector<8x32xf32>
    %23 = vector.extract_strided_slice %8 {offsets = [24, 0], sizes = [8, 32], strides = [1, 1]} : vector<32x32xf32> to vector<8x32xf32>
    %cst_11 = arith.constant dense<0.000000e+00> : vector<8x32xf32>
    %24 = tpu.matmul %22, %2, %cst_11 {dimension_numbers = #tpu.dot_dimension_numbers<[1], [0], [0], [1], [0, 0, 1, 1], [], []>} : vector<8x32xf32>, vector<32x32xf32>, vector<8x32xf32> -> vector<8x32xf32>
    %25 = arith.addf %23, %24 : vector<8x32xf32>
    %26 = math.tanh %25 : vector<8x32xf32>
    %27 = tpu.concatenate %14, %18, %22, %26 in 0 : vector<8x32xf32>, vector<8x32xf32>, vector<8x32xf32>, vector<8x32xf32> -> vector<32x32xf32>
    %c0_12 = arith.constant 0 : index
    %c0_13 = arith.constant 0 : index
    %28 = vector.load %arg5[%c0_12, %c0_13] : memref<64x10xf32, #tpu.memory_space<vmem>>, vector<64x10xf32>
    %cst_14 = arith.constant 0.000000e+00 : f32
    %29 = vector.broadcast %cst_14 : f32 to vector<4x10xf32>
    %30 = vector.extract_strided_slice %27 {offsets = [24, 0], sizes = [4, 32], strides = [1, 1]} : vector<32x32xf32> to vector<4x32xf32>
    %31 = vector.extract_strided_slice %28 {offsets = [0, 0], sizes = [32, 10], strides = [1, 1]} : vector<64x10xf32> to vector<32x10xf32>
    %cst_15 = arith.constant dense<0.000000e+00> : vector<4x10xf32>
    %32 = tpu.matmul %30, %31, %cst_15 {dimension_numbers = #tpu.dot_dimension_numbers<[1], [0], [0], [1], [0, 0, 1, 1], [], []>} : vector<4x32xf32>, vector<32x10xf32>, vector<4x10xf32> -> vector<4x10xf32>
    %33 = arith.addf %29, %32 : vector<4x10xf32>
    %34 = vector.extract_strided_slice %27 {offsets = [28, 0], sizes = [4, 32], strides = [1, 1]} : vector<32x32xf32> to vector<4x32xf32>
    %35 = vector.extract_strided_slice %28 {offsets = [32, 0], sizes = [32, 10], strides = [1, 1]} : vector<64x10xf32> to vector<32x10xf32>
    %cst_16 = arith.constant dense<0.000000e+00> : vector<4x10xf32>
    %36 = tpu.matmul %34, %35, %cst_16 {dimension_numbers = #tpu.dot_dimension_numbers<[1], [0], [0], [1], [0, 0, 1, 1], [], []>} : vector<4x32xf32>, vector<32x10xf32>, vector<4x10xf32> -> vector<4x10xf32>
    %37 = arith.addf %33, %36 : vector<4x10xf32>
    %c0_17 = arith.constant 0 : index
    %c0_18 = arith.constant 0 : index
    %38 = vector.load %arg6[%c0_17, %c0_18] : memref<1x10xf32, #tpu.memory_space<vmem>>, vector<1x10xf32>
    %39 = vector.broadcast %38 : vector<1x10xf32> to vector<4x10xf32>
    %40 = arith.addf %37, %39 : vector<4x10xf32>
    %c0_19 = arith.constant 0 : index
    %c0_20 = arith.constant 0 : index
    %41 = vector.load %arg7[%c0_19, %c0_20] : memref<4x10xf32, #tpu.memory_space<vmem>>, vector<4x10xf32>
    tpu.vector_store %arg7[%c0_19, %c0_20], %40 {strides = array<i32>} : memref<4x10xf32, #tpu.memory_space<vmem>>, vector<4x10xf32>,
    return
  }
}

</mosaic_0001>

<llo_original>
// kernel: tpu_custom_call.1
$region0: #{tpu_custom_call.1}
  #allocation0 [shape = 'u32[]', space=smem, size = 0x4, offset = 0x4, fixed_abs, tag = 'smem constant byte address 0x4 - core index']
  #allocation1 [shape = 'u32[144,128]{1,0:T(1,128)}', space=vmem, size = 0x12000, scoped, tag = 'internal scratch']
  %s0 = inlined_call_operand.vmem [shape: f32[32,1], index: 0, kind: input, shape index: {}]
  %s1 = inlined_call_operand.vmem [shape: f32[4,32], index: 1, kind: input, shape index: {}]
  %s2 = inlined_call_operand.vmem [shape: f32[1,32], index: 2, kind: input, shape index: {}]
  %s3 = inlined_call_operand.vmem [shape: f32[32,32], index: 3, kind: input, shape index: {}]
  %s4 = inlined_call_operand.vmem [shape: f32[1,32], index: 4, kind: input, shape index: {}]
  %s5 = inlined_call_operand.vmem [shape: f32[64,10], index: 5, kind: input, shape index: {}]
  %s6 = inlined_call_operand.vmem [shape: f32[1,10], index: 6, kind: input, shape index: {}]
  %s7 = inlined_call_operand.hbm [shape: f32[4,10], index: 7, kind: output, shape index: {}]
  %s8 = sld [smem:[#allocation0]]
  $region38: #{tpu_custom_call.1} parent=0
    _
  %s10 = ssub.s32 1, %s8
  %s11 = scalar_select 0, %s10, %s8
  $region1: #{tpu_custom_call.1} parent=0
    #allocation2 [shape = 'u8[2048]{0}', space=vmem, size = 0x800, scoped, tag = 'output window, operand 0, single buffered']
    #allocation3 [shape = 's32[1]{0}', space=sflag, size = 0x4, scoped, tag = 'scoped memory for tpu_custom_call.1']
    %12 = vsyncpa [#allocation3], 0
    // Predicated region
    $region2: #{tpu_custom_call.1} parent=1 // pred_check
      _
    $region3: #{tpu_custom_call.1} parent=1 // pred_check_branch
      %14 = sbr.rel (0) target = $region5
    $region4: #{tpu_custom_call.1} parent=1 // pred_region
      _
    $region5: #{tpu_custom_call.1} parent=1 // pred_fallthru
      _
    // Predicated region
    $region6: #{tpu_custom_call.1} parent=1 // pred_check
      _
    $region7: #{tpu_custom_call.1} parent=1 // pred_check_branch
      %16 = sbr.rel (0) target = $region9
    $region8: #{tpu_custom_call.1} parent=1 // pred_region
      _
    $region9: #{tpu_custom_call.1} parent=1 // pred_fallthru
      _
    // Predicated region
    $region10: #{tpu_custom_call.1} parent=1 // pred_check
      _
    $region11: #{tpu_custom_call.1} parent=1 // pred_check_branch
      %18 = sbr.rel (0) target = $region13
    $region12: #{tpu_custom_call.1} parent=1 // pred_region
      _
    $region13: #{tpu_custom_call.1} parent=1 // pred_fallthru
      _
    // Predicated region
    $region14: #{tpu_custom_call.1} parent=1 // pred_check
      _
    $region15: #{tpu_custom_call.1} parent=1 // pred_check_branch
      %20 = sbr.rel (0) target = $region17
    $region16: #{tpu_custom_call.1} parent=1 // pred_region
      _
    $region17: #{tpu_custom_call.1} parent=1 // pred_fallthru
      _
    // Predicated region
    $region18: #{tpu_custom_call.1} parent=1 // pred_check
      _
    $region19: #{tpu_custom_call.1} parent=1 // pred_check_branch
      %22 = sbr.rel (0) target = $region21
    $region20: #{tpu_custom_call.1} parent=1 // pred_region
      _
    $region21: #{tpu_custom_call.1} parent=1 // pred_fallthru
      _
    // Predicated region
    $region22: #{tpu_custom_call.1} parent=1 // pred_check
      _
    $region23: #{tpu_custom_call.1} parent=1 // pred_check_branch
      %24 = sbr.rel (0) target = $region25
    $region24: #{tpu_custom_call.1} parent=1 // pred_region
      _
    $region25: #{tpu_custom_call.1} parent=1 // pred_fallthru
      _
    // Predicated region
    $region26: #{tpu_custom_call.1} parent=1 // pred_check
      _
    $region27: #{tpu_custom_call.1} parent=1 // pred_check_branch
      %26 = sbr.rel (0) target = $region29
    $region28: #{tpu_custom_call.1} parent=1 // pred_region
      _
    $region29: #{tpu_custom_call.1} parent=1 // pred_fallthru
      _
    %v27 = vld [vmem:[%s0] sm:$0xff]
    %v28 = vld [vmem:[%s0 + $0x8] sm:$0xff]
    %v29 = vld [vmem:[%s0 + $0x10] sm:$0xff]
    %v30 = vld [vmem:[%s0 + $0x18] sm:$0xff]
    %v31 = vld [vmem:[%s2] sm:$0x1]
    %v32 = vld [vmem:[%s3] sm:$0xff]
    %v33 = vld [vmem:[%s3 + $0x8] sm:$0xff]
    %v34 = vld [vmem:[%s3 + $0x10] sm:$0xff]
    %v35 = vld [vmem:[%s3 + $0x18] sm:$0xff]
    %v36 = vld [vmem:[%s4] sm:$0x1]
    %38 = vset.pattern.permute.xlu0 0
    %39 = vperm.xlu0 %38, %v27
    %v40 = vpop.permute.xlu0 %39
    %43 = vset.pattern.permute.xlu0 0
    %44 = vperm.xlu0 %43, %v28
    %v45 = vpop.permute.xlu0 %44
    %48 = vset.pattern.permute.xlu0 0
    %49 = vperm.xlu0 %48, %v29
    %v50 = vpop.permute.xlu0 %49
    %53 = vset.pattern.permute.xlu0 0
    %54 = vperm.xlu0 %53, %v30
    %v55 = vpop.permute.xlu0 %54
    %v58 = vlaneseq
    %v59 = vshrl.u32 %v58, 7
    %v60 = vsub.s32 0, %v59
    %v61 = vrot.slane %v31, %v60
    %v63 = vmul.f32 %v40, %v61
    %v64 = vmul.f32 %v45, %v61
    %v65 = vmul.f32 %v50, %v61
    %v66 = vmul.f32 %v55, %v61
    %v68 = vlaneseq
    %v69 = vshrl.u32 %v68, 7
    %v70 = vsub.s32 0, %v69
    %v71 = vrot.slane %v36, %v70
    %v73 = vadd.f32 %v63, %v71
    %v74 = vadd.f32 %v64, %v71
    %v75 = vadd.f32 %v65, %v71
    %v76 = vadd.f32 %v66, %v71
    %v77 = vld [vmem:[%s1] sm:$0xf]
    %v79 = vrot.slane %v77, 4
    %vm81 = vcmask 1043456
    %v82 = vsel %vm81, %v77, %v79
    %vm83 = vcmask 261120
    %v85 = vsel %vm83, %v82, 0
    %87 = vmatprep.subr.mxu0 0.0
    %88 = vmatpush1.msra.mxu0 0.0
    %89 = vmatprep.subr.mxu0 0.0
    %90 = vmatpush1.msra.mxu0 0.0
    %91 = vmatprep.subr.mxu0 0.0
    %92 = vmatpush1.msra.mxu0 0.0
    %93 = vmatprep.subr.mxu0 0.0
    %94 = vmatpush1.msra.mxu0 0.0
    %95 = vmatprep.subr.mxu0 0.0
    %96 = vmatpush1.msra.mxu0 0.0
    %97 = vmatprep.subr.mxu0 0.0
    %98 = vmatpush1.msra.mxu0 0.0
    %99 = vmatprep.subr.mxu0 0.0
    %100 = vmatpush1.msra.mxu0 0.0
    %101 = vmatprep.subr.mxu0 0.0
    %102 = vmatpush1.msra.mxu0 0.0
    %103 = vmatprep.subr.mxu0 0.0
    %104 = vmatpush1.msra.mxu0 0.0
    %105 = vmatprep.subr.mxu0 0.0
    %106 = vmatpush1.msra.mxu0 0.0
    %107 = vmatprep.subr.mxu0 0.0
    %108 = vmatpush1.msra.mxu0 0.0
    %109 = vmatprep.subr.mxu0 0.0
    %110 = vmatpush1.msra.mxu0 0.0
    %111 = vmatprep.subr.mxu0 0.0
    %112 = vmatpush1.msra.mxu0 %v35
    %113 = vmatprep.subr.mxu0 0.0
    %114 = vmatpush1.msra.mxu0 %v34
    %115 = vmatprep.subr.mxu0 0.0
    %116 = vmatpush1.msra.mxu0 %v33
    %117 = vmatprep.subr.mxu0 0.0
    %118 = vmatpush1.msra.mxu0 %v32
    %119 = vmatprep.subr.mxu0 0.0
    %120 = vmatpush2.msra.mxu0 0.0
    %121 = vmatprep.subr.mxu0 0.0
    %122 = vmatpush2.msra.mxu0 0.0
    %123 = vmatprep.subr.mxu0 0.0
    %124 = vmatpush2.msra.mxu0 0.0
    %125 = vmatprep.subr.mxu0 0.0
    %126 = vmatpush2.msra.mxu0 0.0
    %127 = vmatprep.subr.mxu0 0.0
    %128 = vmatpush2.msra.mxu0 0.0
    %129 = vmatprep.subr.mxu0 0.0
    %130 = vmatpush2.msra.mxu0 0.0
    %131 = vmatprep.subr.mxu0 0.0
    %132 = vmatpush2.msra.mxu0 0.0
    %133 = vmatprep.subr.mxu0 0.0
    %134 = vmatpush2.msra.mxu0 0.0
    %135 = vmatprep.subr.mxu0 0.0
    %136 = vmatpush2.msra.mxu0 0.0
    %137 = vmatprep.subr.mxu0 0.0
    %138 = vmatpush2.msra.mxu0 0.0
    %139 = vmatprep.subr.mxu0 0.0
    %140 = vmatpush2.msra.mxu0 0.0
    %141 = vmatprep.subr.mxu0 0.0
    %142 = vmatpush2.msra.mxu0 0.0
    %143 = vmatprep.subr.mxu0 0.0
    %144 = vmatpush2.msra.mxu0 0.0
    %145 = vmatprep.subr.mxu0 0.0
    %146 = vmatpush2.msra.mxu0 0.0
    %147 = vmatprep.subr.mxu0 0.0
    %148 = vmatpush2.msra.mxu0 0.0
    %149 = vmatprep.subr.mxu0 0.0
    %150 = vmatpush2.msra.mxu0 0.0
    %151 = vmatprep.mubr.f32.mxu0 0.0
    %152 = vmatmul.mubr.f32.gmra.mxu0 %v85
    %v153 = vpop.f32.mrf.mxu0
    %v154 = vadd.f32 0.0, %v153
    %v155 = vpop.f32.mrf.mxu0
    %156 = vdwg.mxu0
    %v157 = vadd.f32 %v73, %v154
    %v158 = vtanh.pop %v157
    %v160 = vsel %vm83, %v158, 0
    %162 = vmatprep.subr.mxu0 0.0
    %163 = vmatpush1.msra.mxu0 0.0
    %164 = vmatprep.subr.mxu0 0.0
    %165 = vmatpush1.msra.mxu0 0.0
    %166 = vmatprep.subr.mxu0 0.0
    %167 = vmatpush1.msra.mxu0 0.0
    %168 = vmatprep.subr.mxu0 0.0
    %169 = vmatpush1.msra.mxu0 0.0
    %170 = vmatprep.subr.mxu0 0.0
    %171 = vmatpush1.msra.mxu0 0.0
    %172 = vmatprep.subr.mxu0 0.0
    %173 = vmatpush1.msra.mxu0 0.0
    %174 = vmatprep.subr.mxu0 0.0
    %175 = vmatpush1.msra.mxu0 0.0
    %176 = vmatprep.subr.mxu0 0.0
    %177 = vmatpush1.msra.mxu0 0.0
    %178 = vmatprep.subr.mxu0 0.0
    %179 = vmatpush1.msra.mxu0 0.0
    %180 = vmatprep.subr.mxu0 0.0
    %181 = vmatpush1.msra.mxu0 0.0
    %182 = vmatprep.subr.mxu0 0.0
    %183 = vmatpush1.msra.mxu0 0.0
    %184 = vmatprep.subr.mxu0 0.0
    %185 = vmatpush1.msra.mxu0 0.0
    %186 = vmatprep.subr.mxu0 0.0
    %187 = vmatpush1.msra.mxu0 %v35
    %188 = vmatprep.subr.mxu0 0.0
    %189 = vmatpush1.msra.mxu0 %v34
    %190 = vmatprep.subr.mxu0 0.0
    %191 = vmatpush1.msra.mxu0 %v33
    %192 = vmatprep.subr.mxu0 0.0
    %193 = vmatpush1.msra.mxu0 %v32
    %194 = vmatprep.subr.mxu0 0.0
    %195 = vmatpush2.msra.mxu0 0.0
    %196 = vmatprep.subr.mxu0 0.0
    %197 = vmatpush2.msra.mxu0 0.0
    %198 = vmatprep.subr.mxu0 0.0
    %199 = vmatpush2.msra.mxu0 0.0
    %200 = vmatprep.subr.mxu0 0.0
    %201 = vmatpush2.msra.mxu0 0.0
    %202 = vmatprep.subr.mxu0 0.0
    %203 = vmatpush2.msra.mxu0 0.0
    %204 = vmatprep.subr.mxu0 0.0
    %205 = vmatpush2.msra.mxu0 0.0
    %206 = vmatprep.subr.mxu0 0.0
    %207 = vmatpush2.msra.mxu0 0.0
    %208 = vmatprep.subr.mxu0 0.0
    %209 = vmatpush2.msra.mxu0 0.0
    %210 = vmatprep.subr.mxu0 0.0
    %211 = vmatpush2.msra.mxu0 0.0
    %212 = vmatprep.subr.mxu0 0.0
    %213 = vmatpush2.msra.mxu0 0.0
    %214 = vmatprep.subr.mxu0 0.0
    %215 = vmatpush2.msra.mxu0 0.0
    %216 = vmatprep.subr.mxu0 0.0
    %217 = vmatpush2.msra.mxu0 0.0
    %218 = vmatprep.subr.mxu0 0.0
    %219 = vmatpush2.msra.mxu0 0.0
    %220 = vmatprep.subr.mxu0 0.0
    %221 = vmatpush2.msra.mxu0 0.0
    %222 = vmatprep.subr.mxu0 0.0
    %223 = vmatpush2.msra.mxu0 0.0
    %224 = vmatprep.subr.mxu0 0.0
    %225 = vmatpush2.msra.mxu0 0.0
    %226 = vmatprep.mubr.f32.mxu0 0.0
    %227 = vmatmul.mubr.f32.gmra.mxu0 %v160
    %v228 = vpop.f32.mrf.mxu0
    %v229 = vadd.f32 0.0, %v228
    %v230 = vpop.f32.mrf.mxu0
    %231 = vdwg.mxu0
    %v232 = vadd.f32 %v74, %v229
    %v233 = vtanh.pop %v232
    %v235 = vsel %vm83, %v233, 0
    %237 = vmatprep.subr.mxu0 0.0
    %238 = vmatpush1.msra.mxu0 0.0
    %239 = vmatprep.subr.mxu0 0.0
    %240 = vmatpush1.msra.mxu0 0.0
    %241 = vmatprep.subr.mxu0 0.0
    %242 = vmatpush1.msra.mxu0 0.0
    %243 = vmatprep.subr.mxu0 0.0
    %244 = vmatpush1.msra.mxu0 0.0
    %245 = vmatprep.subr.mxu0 0.0
    %246 = vmatpush1.msra.mxu0 0.0
    %247 = vmatprep.subr.mxu0 0.0
    %248 = vmatpush1.msra.mxu0 0.0
    %249 = vmatprep.subr.mxu0 0.0
    %250 = vmatpush1.msra.mxu0 0.0
    %251 = vmatprep.subr.mxu0 0.0
    %252 = vmatpush1.msra.mxu0 0.0
    %253 = vmatprep.subr.mxu0 0.0
    %254 = vmatpush1.msra.mxu0 0.0
    %255 = vmatprep.subr.mxu0 0.0
    %256 = vmatpush1.msra.mxu0 0.0
    %257 = vmatprep.subr.mxu0 0.0
    %258 = vmatpush1.msra.mxu0 0.0
    %259 = vmatprep.subr.mxu0 0.0
    %260 = vmatpush1.msra.mxu0 0.0
    %261 = vmatprep.subr.mxu0 0.0
    %262 = vmatpush1.msra.mxu0 %v35
    %263 = vmatprep.subr.mxu0 0.0
    %264 = vmatpush1.msra.mxu0 %v34
    %265 = vmatprep.subr.mxu0 0.0
    %266 = vmatpush1.msra.mxu0 %v33
    %267 = vmatprep.subr.mxu0 0.0
    %268 = vmatpush1.msra.mxu0 %v32
    %269 = vmatprep.subr.mxu0 0.0
    %270 = vmatpush2.msra.mxu0 0.0
    %271 = vmatprep.subr.mxu0 0.0
    %272 = vmatpush2.msra.mxu0 0.0
    %273 = vmatprep.subr.mxu0 0.0
    %274 = vmatpush2.msra.mxu0 0.0
    %275 = vmatprep.subr.mxu0 0.0
    %276 = vmatpush2.msra.mxu0 0.0
    %277 = vmatprep.subr.mxu0 0.0
    %278 = vmatpush2.msra.mxu0 0.0
    %279 = vmatprep.subr.mxu0 0.0
    %280 = vmatpush2.msra.mxu0 0.0
    %281 = vmatprep.subr.mxu0 0.0
    %282 = vmatpush2.msra.mxu0 0.0
    %283 = vmatprep.subr.mxu0 0.0
    %284 = vmatpush2.msra.mxu0 0.0
    %285 = vmatprep.subr.mxu0 0.0
    %286 = vmatpush2.msra.mxu0 0.0
    %287 = vmatprep.subr.mxu0 0.0
    %288 = vmatpush2.msra.mxu0 0.0
    %289 = vmatprep.subr.mxu0 0.0
    %290 = vmatpush2.msra.mxu0 0.0
    %291 = vmatprep.subr.mxu0 0.0
    %292 = vmatpush2.msra.mxu0 0.0
    %293 = vmatprep.subr.mxu0 0.0
    %294 = vmatpush2.msra.mxu0 0.0
    %295 = vmatprep.subr.mxu0 0.0
    %296 = vmatpush2.msra.mxu0 0.0
    %297 = vmatprep.subr.mxu0 0.0
    %298 = vmatpush2.msra.mxu0 0.0
    %299 = vmatprep.subr.mxu0 0.0
    %300 = vmatpush2.msra.mxu0 0.0
    %301 = vmatprep.mubr.f32.mxu0 0.0
    %302 = vmatmul.mubr.f32.gmra.mxu0 %v235
    %v303 = vpop.f32.mrf.mxu0
    %v304 = vadd.f32 0.0, %v303
    %v305 = vpop.f32.mrf.mxu0
    %306 = vdwg.mxu0
    %v307 = vadd.f32 %v75, %v304
    %v308 = vtanh.pop %v307
    %v310 = vsel %vm83, %v308, 0
    %312 = vmatprep.subr.mxu0 0.0
    %313 = vmatpush1.msra.mxu0 0.0
    %314 = vmatprep.subr.mxu0 0.0
    %315 = vmatpush1.msra.mxu0 0.0
    %316 = vmatprep.subr.mxu0 0.0
    %317 = vmatpush1.msra.mxu0 0.0
    %318 = vmatprep.subr.mxu0 0.0
    %319 = vmatpush1.msra.mxu0 0.0
    %320 = vmatprep.subr.mxu0 0.0
    %321 = vmatpush1.msra.mxu0 0.0
    %322 = vmatprep.subr.mxu0 0.0
    %323 = vmatpush1.msra.mxu0 0.0
    %324 = vmatprep.subr.mxu0 0.0
    %325 = vmatpush1.msra.mxu0 0.0
    %326 = vmatprep.subr.mxu0 0.0
    %327 = vmatpush1.msra.mxu0 0.0
    %328 = vmatprep.subr.mxu0 0.0
    %329 = vmatpush1.msra.mxu0 0.0
    %330 = vmatprep.subr.mxu0 0.0
    %331 = vmatpush1.msra.mxu0 0.0
    %332 = vmatprep.subr.mxu0 0.0
    %333 = vmatpush1.msra.mxu0 0.0
    %334 = vmatprep.subr.mxu0 0.0
    %335 = vmatpush1.msra.mxu0 0.0
    %336 = vmatprep.subr.mxu0 0.0
    %337 = vmatpush1.msra.mxu0 %v35
    %338 = vmatprep.subr.mxu0 0.0
    %339 = vmatpush1.msra.mxu0 %v34
    %340 = vmatprep.subr.mxu0 0.0
    %341 = vmatpush1.msra.mxu0 %v33
    %342 = vmatprep.subr.mxu0 0.0
    %343 = vmatpush1.msra.mxu0 %v32
    %344 = vmatprep.subr.mxu0 0.0
    %345 = vmatpush2.msra.mxu0 0.0
    %346 = vmatprep.subr.mxu0 0.0
    %347 = vmatpush2.msra.mxu0 0.0
    %348 = vmatprep.subr.mxu0 0.0
    %349 = vmatpush2.msra.mxu0 0.0
    %350 = vmatprep.subr.mxu0 0.0
    %351 = vmatpush2.msra.mxu0 0.0
    %352 = vmatprep.subr.mxu0 0.0
    %353 = vmatpush2.msra.mxu0 0.0
    %354 = vmatprep.subr.mxu0 0.0
    %355 = vmatpush2.msra.mxu0 0.0
    %356 = vmatprep.subr.mxu0 0.0
    %357 = vmatpush2.msra.mxu0 0.0
    %358 = vmatprep.subr.mxu0 0.0
    %359 = vmatpush2.msra.mxu0 0.0
    %360 = vmatprep.subr.mxu0 0.0
    %361 = vmatpush2.msra.mxu0 0.0
    %362 = vmatprep.subr.mxu0 0.0
    %363 = vmatpush2.msra.mxu0 0.0
    %364 = vmatprep.subr.mxu0 0.0
    %365 = vmatpush2.msra.mxu0 0.0
    %366 = vmatprep.subr.mxu0 0.0
    %367 = vmatpush2.msra.mxu0 0.0
    %368 = vmatprep.subr.mxu0 0.0
    %369 = vmatpush2.msra.mxu0 0.0
    %370 = vmatprep.subr.mxu0 0.0
    %371 = vmatpush2.msra.mxu0 0.0
    %372 = vmatprep.subr.mxu0 0.0
    %373 = vmatpush2.msra.mxu0 0.0
    %374 = vmatprep.subr.mxu0 0.0
    %375 = vmatpush2.msra.mxu0 0.0
    %376 = vmatprep.mubr.f32.mxu0 0.0
    %377 = vmatmul.mubr.f32.gmra.mxu0 %v310
    %v378 = vpop.f32.mrf.mxu0
    %v379 = vadd.f32 0.0, %v378
    %v380 = vpop.f32.mrf.mxu0
    %381 = vdwg.mxu0
    %v382 = vadd.f32 %v76, %v379
    %v383 = vtanh.pop %v382
    %v384 = vld [vmem:[%s5] sm:$0xff]
    %v385 = vld [vmem:[%s5 + $0x8] sm:$0xff]
    %v386 = vld [vmem:[%s5 + $0x10] sm:$0xff]
    %v387 = vld [vmem:[%s5 + $0x18] sm:$0xff]
    %v388 = vld [vmem:[%s5 + $0x20] sm:$0xff]
    %v389 = vld [vmem:[%s5 + $0x28] sm:$0xff]
    %v390 = vld [vmem:[%s5 + $0x30] sm:$0xff]
    %v391 = vld [vmem:[%s5 + $0x38] sm:$0xff]
    %v393 = vrot.slane %v383, 4
    %v394 = vsel %vm83, %v393, 0
    %396 = vmatprep.subr.mxu0 0.0
    %397 = vmatpush1.msra.mxu0 0.0
    %398 = vmatprep.subr.mxu0 0.0
    %399 = vmatpush1.msra.mxu0 0.0
    %400 = vmatprep.subr.mxu0 0.0
    %401 = vmatpush1.msra.mxu0 0.0
    %402 = vmatprep.subr.mxu0 0.0
    %403 = vmatpush1.msra.mxu0 0.0
    %404 = vmatprep.subr.mxu0 0.0
    %405 = vmatpush1.msra.mxu0 0.0
    %406 = vmatprep.subr.mxu0 0.0
    %407 = vmatpush1.msra.mxu0 0.0
    %408 = vmatprep.subr.mxu0 0.0
    %409 = vmatpush1.msra.mxu0 0.0
    %410 = vmatprep.subr.mxu0 0.0
    %411 = vmatpush1.msra.mxu0 0.0
    %412 = vmatprep.subr.mxu0 0.0
    %413 = vmatpush1.msra.mxu0 0.0
    %414 = vmatprep.subr.mxu0 0.0
    %415 = vmatpush1.msra.mxu0 0.0
    %416 = vmatprep.subr.mxu0 0.0
    %417 = vmatpush1.msra.mxu0 0.0
    %418 = vmatprep.subr.mxu0 0.0
    %419 = vmatpush1.msra.mxu0 0.0
    %420 = vmatprep.subr.mxu0 0.0
    %421 = vmatpush1.msra.mxu0 %v391
    %422 = vmatprep.subr.mxu0 0.0
    %423 = vmatpush1.msra.mxu0 %v390
    %424 = vmatprep.subr.mxu0 0.0
    %425 = vmatpush1.msra.mxu0 %v389
    %426 = vmatprep.subr.mxu0 0.0
    %427 = vmatpush1.msra.mxu0 %v388
    %428 = vmatprep.subr.mxu0 0.0
    %429 = vmatpush2.msra.mxu0 0.0
    %430 = vmatprep.subr.mxu0 0.0
    %431 = vmatpush2.msra.mxu0 0.0
    %432 = vmatprep.subr.mxu0 0.0
    %433 = vmatpush2.msra.mxu0 0.0
    %434 = vmatprep.subr.mxu0 0.0
    %435 = vmatpush2.msra.mxu0 0.0
    %436 = vmatprep.subr.mxu0 0.0
    %437 = vmatpush2.msra.mxu0 0.0
    %438 = vmatprep.subr.mxu0 0.0
    %439 = vmatpush2.msra.mxu0 0.0
    %440 = vmatprep.subr.mxu0 0.0
    %441 = vmatpush2.msra.mxu0 0.0
    %442 = vmatprep.subr.mxu0 0.0
    %443 = vmatpush2.msra.mxu0 0.0
    %444 = vmatprep.subr.mxu0 0.0
    %445 = vmatpush2.msra.mxu0 0.0
    %446 = vmatprep.subr.mxu0 0.0
    %447 = vmatpush2.msra.mxu0 0.0
    %448 = vmatprep.subr.mxu0 0.0
    %449 = vmatpush2.msra.mxu0 0.0
    %450 = vmatprep.subr.mxu0 0.0
    %451 = vmatpush2.msra.mxu0 0.0
    %452 = vmatprep.subr.mxu0 0.0
    %453 = vmatpush2.msra.mxu0 0.0
    %454 = vmatprep.subr.mxu0 0.0
    %455 = vmatpush2.msra.mxu0 0.0
    %456 = vmatprep.subr.mxu0 0.0
    %457 = vmatpush2.msra.mxu0 0.0
    %458 = vmatprep.subr.mxu0 0.0
    %459 = vmatpush2.msra.mxu0 0.0
    %460 = vmatprep.mubr.f32.mxu0 0.0
    %461 = vmatmul.mubr.f32.gmra.mxu0 %v394
    %v462 = vpop.f32.mrf.mxu0
    %v463 = vadd.f32 0.0, %v462
    %v464 = vpop.f32.mrf.mxu0
    %465 = vdwg.mxu0
    %v466 = vsel %vm83, %v383, 0
    %468 = vmatprep.subr.mxu0 0.0
    %469 = vmatpush1.msra.mxu0 0.0
    %470 = vmatprep.subr.mxu0 0.0
    %471 = vmatpush1.msra.mxu0 0.0
    %472 = vmatprep.subr.mxu0 0.0
    %473 = vmatpush1.msra.mxu0 0.0
    %474 = vmatprep.subr.mxu0 0.0
    %475 = vmatpush1.msra.mxu0 0.0
    %476 = vmatprep.subr.mxu0 0.0
    %477 = vmatpush1.msra.mxu0 0.0
    %478 = vmatprep.subr.mxu0 0.0
    %479 = vmatpush1.msra.mxu0 0.0
    %480 = vmatprep.subr.mxu0 0.0
    %481 = vmatpush1.msra.mxu0 0.0
    %482 = vmatprep.subr.mxu0 0.0
    %483 = vmatpush1.msra.mxu0 0.0
    %484 = vmatprep.subr.mxu0 0.0
    %485 = vmatpush1.msra.mxu0 0.0
    %486 = vmatprep.subr.mxu0 0.0
    %487 = vmatpush1.msra.mxu0 0.0
    %488 = vmatprep.subr.mxu0 0.0
    %489 = vmatpush1.msra.mxu0 0.0
    %490 = vmatprep.subr.mxu0 0.0
    %491 = vmatpush1.msra.mxu0 0.0
    %492 = vmatprep.subr.mxu0 0.0
    %493 = vmatpush1.msra.mxu0 %v387
    %494 = vmatprep.subr.mxu0 0.0
    %495 = vmatpush1.msra.mxu0 %v386
    %496 = vmatprep.subr.mxu0 0.0
    %497 = vmatpush1.msra.mxu0 %v385
    %498 = vmatprep.subr.mxu0 0.0
    %499 = vmatpush1.msra.mxu0 %v384
    %500 = vmatprep.subr.mxu0 0.0
    %501 = vmatpush2.msra.mxu0 0.0
    %502 = vmatprep.subr.mxu0 0.0
    %503 = vmatpush2.msra.mxu0 0.0
    %504 = vmatprep.subr.mxu0 0.0
    %505 = vmatpush2.msra.mxu0 0.0
    %506 = vmatprep.subr.mxu0 0.0
    %507 = vmatpush2.msra.mxu0 0.0
    %508 = vmatprep.subr.mxu0 0.0
    %509 = vmatpush2.msra.mxu0 0.0
    %510 = vmatprep.subr.mxu0 0.0
    %511 = vmatpush2.msra.mxu0 0.0
    %512 = vmatprep.subr.mxu0 0.0
    %513 = vmatpush2.msra.mxu0 0.0
    %514 = vmatprep.subr.mxu0 0.0
    %515 = vmatpush2.msra.mxu0 0.0
    %516 = vmatprep.subr.mxu0 0.0
    %517 = vmatpush2.msra.mxu0 0.0
    %518 = vmatprep.subr.mxu0 0.0
    %519 = vmatpush2.msra.mxu0 0.0
    %520 = vmatprep.subr.mxu0 0.0
    %521 = vmatpush2.msra.mxu0 0.0
    %522 = vmatprep.subr.mxu0 0.0
    %523 = vmatpush2.msra.mxu0 0.0
    %524 = vmatprep.subr.mxu0 0.0
    %525 = vmatpush2.msra.mxu0 0.0
    %526 = vmatprep.subr.mxu0 0.0
    %527 = vmatpush2.msra.mxu0 0.0
    %528 = vmatprep.subr.mxu0 0.0
    %529 = vmatpush2.msra.mxu0 0.0
    %530 = vmatprep.subr.mxu0 0.0
    %531 = vmatpush2.msra.mxu0 0.0
    %532 = vmatprep.mubr.f32.mxu0 0.0
    %533 = vmatmul.mubr.f32.gmra.mxu0 %v466
    %v534 = vpop.f32.mrf.mxu0
    %v535 = vadd.f32 %v463, %v534
    %v536 = vpop.f32.mrf.mxu0
    %537 = vdwg.mxu0
    %v538 = vld [vmem:[%s6] sm:$0x1]
    %v540 = vlaneseq
    %v541 = vshrl.u32 %v540, 7
    %v542 = vsub.s32 0, %v541
    %v543 = vrot.slane %v538, %v542
    %v545 = vadd.f32 %v535, %v543
    %vm546 = vcmask 76800
    %547 = vst.msk [vmem:[#allocation2] sm:$0xf] %vm546, %v545
    // Predicated region
    $region30: #{tpu_custom_call.1} parent=1 // pred_check
      _
    $region31: #{tpu_custom_call.1} parent=1 // pred_check_branch
      %549 = sbr.rel (0) target = $region33
    $region32: #{tpu_custom_call.1} parent=1 // pred_region
      %s551 = ssub.s32 64, 64
      %552 = vsyncadd [#allocation3], %s551
      %s554 = sshll.u32 [#allocation2], 4
      %s555 = int_to_ptr.vmem [resolvable:$true] %s554
      %557 = dma.vmem_to_hbm [thread:$0]  %s555, 64, %s7, [#allocation3]
    $region33: #{tpu_custom_call.1} parent=1 // pred_fallthru
      _
    // Predicated region
    $region34: #{tpu_custom_call.1} parent=1 // pred_check
      _
    $region35: #{tpu_custom_call.1} parent=1 // pred_check_branch
      %559 = sbr.rel (0) target = $region37
    $region36: #{tpu_custom_call.1} parent=1 // pred_region
      %560 = dma.done [#allocation3], 64
    $region37: #{tpu_custom_call.1} parent=1 // pred_fallthru
      _
    %561 = vsyncpa [#allocation3], 1

</llo_original>
